<compile_context>
chip_gen: v6e
topology: v6e:2x2x1
jax: 0.10.0
libtpu: 0.0.40
codegen_flags: <defaults>
</compile_context>

<pallas_src>
import functools

import jax
import jax.numpy as jnp
from jax.experimental import pallas as pl
from jax.experimental.pallas import tpu as pltpu


def _basic_conv_kernel(x_ref, w_ref, b_ref, o_ref, patch_ref, *,
                       kh_size, kw_size, stride, tr, wo, cin, cout, relu):
    """One (batch, output-row-tile) grid step.

    x_ref     : (1, WIN, Wp, Cin)     halo'd, zero-padded input row window
    w_ref     : (KH*KW*Cin, Cout)     im2col-folded weights (VMEM-resident)
    b_ref     : (Cout, 1)             bias
    o_ref     : (1, Cout, TR*Wo)      lane-dense output tile
    patch_ref : (TR, Wo, KH*KW*Cin)   VMEM scratch: im2col patch matrix
    """
    # Build the im2col patch matrix by slicing each tap straight from the ref.
    for kh in range(kh_size):
        for kw in range(kw_size):
            if stride == 1:
                row_sl = pl.ds(kh, tr)
                col_sl = pl.ds(kw, wo)
            else:
                row_sl = pl.ds(kh, tr, stride=stride)
                col_sl = pl.ds(kw, wo, stride=stride)
            tap = x_ref[0, row_sl, col_sl, :]                     # (TR, Wo, Cin)
            c0 = (kh * kw_size + kw) * cin
            patch_ref[:, :, c0:c0 + cin] = tap.astype(patch_ref.dtype)

    k_dim = kh_size * kw_size * cin
    patches = patch_ref[...].reshape(tr * wo, k_dim)              # (M, K)
    acc = jnp.dot(patches, w_ref[...],
                  preferred_element_type=jnp.float32)             # (M, Cout) f32
    # Transpose to the lane-dense (Cout, M) layout before bias/ReLU/store so the
    # epilogue works on full 128-lane vregs and the store is unmasked.
    acc = acc.T + b_ref[...]                                      # (Cout, M)
    if relu:
        acc = jnp.maximum(acc, 0.0)
    o_ref[0] = acc.astype(o_ref.dtype)


def basic_conv(x_nchw, weight, bias, *, stride=1, relu=True,
               row_tile=None, mxu_dtype=None):
    """BasicConv forward: Conv2d(padding=k//2, stride) + bias (+ ReLU).

    x_nchw : (N, Cin, H, W)          (PyTorch layout)
    weight : (Cout, Cin, KH, KW)     (PyTorch layout)
    bias   : (Cout,)
    returns: (N, Cout, Ho, Wo)

    row_tile : output rows per grid step (must divide Ho).  On v7x (64 MiB VMEM)
               keep (WIN*Wp*Cin + Cout*row_tile*Wo)*2 well under the scoped
               VMEM limit when scaling to large images.
    mxu_dtype: e.g. jnp.bfloat16 on v6e/v7x for MXU-peak operands; accumulation,
               bias and ReLU stay f32.
    """
    # TODO(synk): norm=True (BatchNorm2d) and transpose=True (ConvTranspose2d)
    # branches of BasicConv are not implemented; this is the default conv path.
    n, cin, h, w = x_nchw.shape
    cout, cin_w, kh_size, kw_size = weight.shape
    assert cin == cin_w
    pad_h, pad_w = kh_size // 2, kw_size // 2
    ho = (h + 2 * pad_h - kh_size) // stride + 1
    wo = (w + 2 * pad_w - kw_size) // stride + 1

    if row_tile is None:
        row_tile = 8 if (ho % 8 == 0 and ho > 8) else ho
    if ho % row_tile != 0:
        raise ValueError("row_tile must divide the output height")
    r_tiles = ho // row_tile
    win = (row_tile - 1) * stride + kh_size      # input rows per tile (w/ halo)
    wp = w + 2 * pad_w
    k_dim = kh_size * kw_size * cin

    # Glue (plain XLA): layout change, zero padding, halo'd row windows so each
    # grid step's input block is a simple non-overlapping Blocked slice.
    x_nhwc = jnp.transpose(x_nchw, (0, 2, 3, 1))                  # (N,H,W,Cin)
    x_pad = jnp.pad(x_nhwc, ((0, 0), (pad_h, pad_h), (pad_w, pad_w), (0, 0)))
    x_win = jnp.stack(
        [x_pad[:, r * row_tile * stride: r * row_tile * stride + win]
         for r in range(r_tiles)], axis=1)                        # (N,R,WIN,Wp,Cin)
    x_win = x_win.reshape(n * r_tiles, win, wp, cin)

    # Fold weights once in the wrapper to the contraction-friendly layout.
    w2 = jnp.transpose(weight, (2, 3, 1, 0)).reshape(k_dim, cout)
    patch_dtype = x_nchw.dtype
    if mxu_dtype is not None:
        w2 = w2.astype(mxu_dtype)
        patch_dtype = mxu_dtype
    b2 = bias.astype(jnp.float32).reshape(cout, 1)

    kernel = functools.partial(
        _basic_conv_kernel, kh_size=kh_size, kw_size=kw_size, stride=stride,
        tr=row_tile, wo=wo, cin=cin, cout=cout, relu=relu)

    out = pl.pallas_call(
        kernel,
        out_shape=jax.ShapeDtypeStruct((n * r_tiles, cout, row_tile * wo),
                                       x_nchw.dtype),
        grid_spec=pltpu.PrefetchScalarGridSpec(
            num_scalar_prefetch=0,
            grid=(n, r_tiles),
            in_specs=[
                pl.BlockSpec((1, win, wp, cin),
                             lambda i, r: (i * r_tiles + r, 0, 0, 0)),
                pl.BlockSpec((k_dim, cout), lambda i, r: (0, 0)),   # resident
                pl.BlockSpec((cout, 1), lambda i, r: (0, 0)),       # resident
            ],
            out_specs=pl.BlockSpec((1, cout, row_tile * wo),
                                   lambda i, r: (i * r_tiles + r, 0, 0)),
            scratch_shapes=[pltpu.VMEM((row_tile, wo, k_dim), patch_dtype)],
        ),
        compiler_params=pltpu.CompilerParams(
            dimension_semantics=("parallel", "parallel")),
    )(x_win, w2, b2)

    # (N*R, Cout, TR*Wo) -> (N, Cout, Ho, Wo)
    out = out.reshape(n, r_tiles, cout, row_tile, wo)
    out = jnp.transpose(out, (0, 2, 1, 3, 4)).reshape(n, cout, ho, wo)
    return out


if __name__ == "__main__":
    # BasicConv(in_channel=4, out_channel=8, kernel_size=3, stride=1,
    #           bias=True, norm=False, relu=True, transpose=False)
    N, CIN, H, W = 2, 4, 16, 16
    COUT, K, STRIDE = 8, 3, 1

    key = jax.random.PRNGKey(0)
    kx, kw, kb = jax.random.split(key, 3)
    x = jax.random.normal(kx, (N, CIN, H, W), dtype=jnp.float32)
    fan_in = CIN * K * K
    bound = 1.0 / (fan_in ** 0.5)
    weight = jax.random.uniform(kw, (COUT, CIN, K, K), jnp.float32, -bound, bound)
    bias = jax.random.uniform(kb, (COUT,), jnp.float32, -bound, bound)

    out = basic_conv(x, weight, bias, stride=STRIDE, relu=True)
    out = jax.block_until_ready(out)

    # Correctness check against XLA's reference conv + bias + ReLU.
    ref = jax.lax.conv_general_dilated(
        x, weight, window_strides=(STRIDE, STRIDE),
        padding=[(K // 2, K // 2), (K // 2, K // 2)],
        dimension_numbers=("NCHW", "OIHW", "NCHW"))
    ref = jnp.maximum(ref + bias.reshape(1, COUT, 1, 1), 0.0)
    assert out.shape == ref.shape
    assert float(jnp.max(jnp.abs(out - ref))) < 1e-4

    print("KERNEL_OK")
</pallas_src>

<mosaic_0001>
module attributes {stable_mosaic.version = 11 : i64} {
  func.func @_basic_conv_kernel(%arg0: i32, %arg1: i32, %arg2: memref<1x10x18x4xf32, #tpu.memory_space<vmem>>, %arg3: memref<36x8xf32, #tpu.memory_space<vmem>>, %arg4: memref<8x1xf32, #tpu.memory_space<vmem>>, %arg5: memref<1x8x128xf32, #tpu.memory_space<vmem>>, %arg6: memref<8x16x36xf32, #tpu.memory_space<vmem>>) attributes {dimension_semantics = [#tpu.dimension_semantics<parallel>, #tpu.dimension_semantics<parallel>], iteration_bounds = array<i64: 2, 2>, scalar_prefetch = 0 : i64, scratch_operands = 1 : i64, tpu.core_type = #tpu.core_type<tc>, window_params = [{transform_indices = @transform_0, window_bounds = array<i64: 1, 10, 18, 4>}, {pipeline_mode = #tpu.pipeline_mode<synchronous>, transform_indices = @transform_1, window_bounds = array<i64: 36, 8>}, {pipeline_mode = #tpu.pipeline_mode<synchronous>, transform_indices = @transform_2, window_bounds = array<i64: 8, 1>}, {transform_indices = @transform_3, window_bounds = array<i64: 1, 8, 128>}]} {
    %c0 = arith.constant 0 : index
    %c0_0 = arith.constant 0 : index
    %c0_1 = arith.constant 0 : index
    %c0_2 = arith.constant 0 : index
    %0 = vector.load %arg2[%c0, %c0_0, %c0_1, %c0_2] : memref<1x10x18x4xf32, #tpu.memory_space<vmem>>, vector<1x8x16x4xf32>
    %1 = vector.shape_cast %0 : vector<1x8x16x4xf32> to vector<8x16x4xf32>
    %c0_3 = arith.constant 0 : index
    %c0_4 = arith.constant 0 : index
    %c0_5 = arith.constant 0 : index
    %2 = vector.load %arg6[%c0_3, %c0_4, %c0_5] : memref<8x16x36xf32, #tpu.memory_space<vmem>>, vector<8x16x4xf32>
    tpu.vector_store %arg6[%c0_3, %c0_4, %c0_5], %1 {strides = array<i32>} : memref<8x16x36xf32, #tpu.memory_space<vmem>>, vector<8x16x4xf32>,
    %c0_6 = arith.constant 0 : index
    %c0_7 = arith.constant 0 : index
    %c1 = arith.constant 1 : index
    %c0_8 = arith.constant 0 : index
    %3 = vector.load %arg2[%c0_6, %c0_7, %c1, %c0_8] : memref<1x10x18x4xf32, #tpu.memory_space<vmem>>, vector<1x8x16x4xf32>
    %4 = vector.shape_cast %3 : vector<1x8x16x4xf32> to vector<8x16x4xf32>
    %c0_9 = arith.constant 0 : index
    %c0_10 = arith.constant 0 : index
    %c4 = arith.constant 4 : index
    %5 = vector.load %arg6[%c0_9, %c0_10, %c4] : memref<8x16x36xf32, #tpu.memory_space<vmem>>, vector<8x16x4xf32>
    tpu.vector_store %arg6[%c0_9, %c0_10, %c4], %4 {strides = array<i32>} : memref<8x16x36xf32, #tpu.memory_space<vmem>>, vector<8x16x4xf32>,
    %c0_11 = arith.constant 0 : index
    %c0_12 = arith.constant 0 : index
    %c2 = arith.constant 2 : index
    %c0_13 = arith.constant 0 : index
    %6 = vector.load %arg2[%c0_11, %c0_12, %c2, %c0_13] : memref<1x10x18x4xf32, #tpu.memory_space<vmem>>, vector<1x8x16x4xf32>
    %7 = vector.shape_cast %6 : vector<1x8x16x4xf32> to vector<8x16x4xf32>
    %c0_14 = arith.constant 0 : index
    %c0_15 = arith.constant 0 : index
    %c8 = arith.constant 8 : index
    %8 = vector.load %arg6[%c0_14, %c0_15, %c8] : memref<8x16x36xf32, #tpu.memory_space<vmem>>, vector<8x16x4xf32>
    tpu.vector_store %arg6[%c0_14, %c0_15, %c8], %7 {strides = array<i32>} : memref<8x16x36xf32, #tpu.memory_space<vmem>>, vector<8x16x4xf32>,
    %c0_16 = arith.constant 0 : index
    %c1_17 = arith.constant 1 : index
    %c0_18 = arith.constant 0 : index
    %c0_19 = arith.constant 0 : index
    %9 = vector.load %arg2[%c0_16, %c1_17, %c0_18, %c0_19] : memref<1x10x18x4xf32, #tpu.memory_space<vmem>>, vector<1x8x16x4xf32>
    %10 = vector.shape_cast %9 : vector<1x8x16x4xf32> to vector<8x16x4xf32>
    %c0_20 = arith.constant 0 : index
    %c0_21 = arith.constant 0 : index
    %c12 = arith.constant 12 : index
    %11 = vector.load %arg6[%c0_20, %c0_21, %c12] : memref<8x16x36xf32, #tpu.memory_space<vmem>>, vector<8x16x4xf32>
    tpu.vector_store %arg6[%c0_20, %c0_21, %c12], %10 {strides = array<i32>} : memref<8x16x36xf32, #tpu.memory_space<vmem>>, vector<8x16x4xf32>,
    %c0_22 = arith.constant 0 : index
    %c1_23 = arith.constant 1 : index
    %c1_24 = arith.constant 1 : index
    %c0_25 = arith.constant 0 : index
    %12 = vector.load %arg2[%c0_22, %c1_23, %c1_24, %c0_25] : memref<1x10x18x4xf32, #tpu.memory_space<vmem>>, vector<1x8x16x4xf32>
    %13 = vector.shape_cast %12 : vector<1x8x16x4xf32> to vector<8x16x4xf32>
    %c0_26 = arith.constant 0 : index
    %c0_27 = arith.constant 0 : index
    %c16 = arith.constant 16 : index
    %14 = vector.load %arg6[%c0_26, %c0_27, %c16] : memref<8x16x36xf32, #tpu.memory_space<vmem>>, vector<8x16x4xf32>
    tpu.vector_store %arg6[%c0_26, %c0_27, %c16], %13 {strides = array<i32>} : memref<8x16x36xf32, #tpu.memory_space<vmem>>, vector<8x16x4xf32>,
    %c0_28 = arith.constant 0 : index
    %c1_29 = arith.constant 1 : index
    %c2_30 = arith.constant 2 : index
    %c0_31 = arith.constant 0 : index
    %15 = vector.load %arg2[%c0_28, %c1_29, %c2_30, %c0_31] : memref<1x10x18x4xf32, #tpu.memory_space<vmem>>, vector<1x8x16x4xf32>
    %16 = vector.shape_cast %15 : vector<1x8x16x4xf32> to vector<8x16x4xf32>
    %c0_32 = arith.constant 0 : index
    %c0_33 = arith.constant 0 : index
    %c20 = arith.constant 20 : index
    %17 = vector.load %arg6[%c0_32, %c0_33, %c20] : memref<8x16x36xf32, #tpu.memory_space<vmem>>, vector<8x16x4xf32>
    tpu.vector_store %arg6[%c0_32, %c0_33, %c20], %16 {strides = array<i32>} : memref<8x16x36xf32, #tpu.memory_space<vmem>>, vector<8x16x4xf32>,
    %c0_34 = arith.constant 0 : index
    %c2_35 = arith.constant 2 : index
    %c0_36 = arith.constant 0 : index
    %c0_37 = arith.constant 0 : index
    %18 = vector.load %arg2[%c0_34, %c2_35, %c0_36, %c0_37] : memref<1x10x18x4xf32, #tpu.memory_space<vmem>>, vector<1x8x16x4xf32>
    %19 = vector.shape_cast %18 : vector<1x8x16x4xf32> to vector<8x16x4xf32>
    %c0_38 = arith.constant 0 : index
    %c0_39 = arith.constant 0 : index
    %c24 = arith.constant 24 : index
    %20 = vector.load %arg6[%c0_38, %c0_39, %c24] : memref<8x16x36xf32, #tpu.memory_space<vmem>>, vector<8x16x4xf32>
    tpu.vector_store %arg6[%c0_38, %c0_39, %c24], %19 {strides = array<i32>} : memref<8x16x36xf32, #tpu.memory_space<vmem>>, vector<8x16x4xf32>,
    %c0_40 = arith.constant 0 : index
    %c2_41 = arith.constant 2 : index
    %c1_42 = arith.constant 1 : index
    %c0_43 = arith.constant 0 : index
    %21 = vector.load %arg2[%c0_40, %c2_41, %c1_42, %c0_43] : memref<1x10x18x4xf32, #tpu.memory_space<vmem>>, vector<1x8x16x4xf32>
    %22 = vector.shape_cast %21 : vector<1x8x16x4xf32> to vector<8x16x4xf32>
    %c0_44 = arith.constant 0 : index
    %c0_45 = arith.constant 0 : index
    %c28 = arith.constant 28 : index
    %23 = vector.load %arg6[%c0_44, %c0_45, %c28] : memref<8x16x36xf32, #tpu.memory_space<vmem>>, vector<8x16x4xf32>
    tpu.vector_store %arg6[%c0_44, %c0_45, %c28], %22 {strides = array<i32>} : memref<8x16x36xf32, #tpu.memory_space<vmem>>, vector<8x16x4xf32>,
    %c0_46 = arith.constant 0 : index
    %c2_47 = arith.constant 2 : index
    %c2_48 = arith.constant 2 : index
    %c0_49 = arith.constant 0 : index
    %24 = vector.load %arg2[%c0_46, %c2_47, %c2_48, %c0_49] : memref<1x10x18x4xf32, #tpu.memory_space<vmem>>, vector<1x8x16x4xf32>
    %25 = vector.shape_cast %24 : vector<1x8x16x4xf32> to vector<8x16x4xf32>
    %c0_50 = arith.constant 0 : index
    %c0_51 = arith.constant 0 : index
    %c32 = arith.constant 32 : index
    %26 = vector.load %arg6[%c0_50, %c0_51, %c32] : memref<8x16x36xf32, #tpu.memory_space<vmem>>, vector<8x16x4xf32>
    tpu.vector_store %arg6[%c0_50, %c0_51, %c32], %25 {strides = array<i32>} : memref<8x16x36xf32, #tpu.memory_space<vmem>>, vector<8x16x4xf32>,
    %c0_52 = arith.constant 0 : index
    %c0_53 = arith.constant 0 : index
    %c0_54 = arith.constant 0 : index
    %27 = vector.load %arg6[%c0_52, %c0_53, %c0_54] : memref<8x16x36xf32, #tpu.memory_space<vmem>>, vector<8x16x36xf32>
    %28 = vector.shape_cast %27 : vector<8x16x36xf32> to vector<128x36xf32>
    %c0_55 = arith.constant 0 : index
    %c0_56 = arith.constant 0 : index
    %29 = vector.load %arg3[%c0_55, %c0_56] : memref<36x8xf32, #tpu.memory_space<vmem>>, vector<36x8xf32>
    %cst = arith.constant dense<0.000000e+00> : vector<128x8xf32>
    %30 = tpu.matmul %28, %29, %cst {dimension_numbers = #tpu.dot_dimension_numbers<[1], [0], [0], [1], [0, 0, 1, 1], [], []>} : vector<128x36xf32>, vector<36x8xf32>, vector<128x8xf32> -> vector<128x8xf32>
    %31 = tpu.transpose %30, [1, 0] : vector<128x8xf32> -> vector<8x128xf32>
    %c0_57 = arith.constant 0 : index
    %c0_58 = arith.constant 0 : index
    %32 = vector.load %arg4[%c0_57, %c0_58] : memref<8x1xf32, #tpu.memory_space<vmem>>, vector<8x1xf32>
    %33 = vector.broadcast %32 : vector<8x1xf32> to vector<8x128xf32>
    %34 = arith.addf %31, %33 : vector<8x128xf32>
    %cst_59 = arith.constant 0.000000e+00 : f32
    %35 = vector.broadcast %cst_59 : f32 to vector<8x128xf32>
    %36 = arith.maximumf %34, %35 : vector<8x128xf32>
    %c0_60 = arith.constant 0 : index
    %c0_61 = arith.constant 0 : index
    %c0_62 = arith.constant 0 : index
    %37 = vector.load %arg5[%c0_60, %c0_61, %c0_62] : memref<1x8x128xf32, #tpu.memory_space<vmem>>, vector<1x8x128xf32>
    %38 = vector.shape_cast %37 : vector<1x8x128xf32> to vector<8x128xf32>
    %39 = vector.shape_cast %36 : vector<8x128xf32> to vector<1x8x128xf32>
    tpu.vector_store %arg5[%c0_60, %c0_61, %c0_62], %39 {strides = array<i32>} : memref<1x8x128xf32, #tpu.memory_space<vmem>>, vector<1x8x128xf32>,
    return
  }
  func.func @transform_0(%arg0: i32, %arg1: i32) -> (i32, i32, i32, i32) {
    %c2_i32 = arith.constant 2 : i32
    %0 = arith.muli %arg0, %c2_i32 : i32
    %1 = arith.addi %0, %arg1 : i32
    %c0_i32 = arith.constant 0 : i32
    %c0_i32_0 = arith.constant 0 : i32
    %c0_i32_1 = arith.constant 0 : i32
    %c0_i32_2 = arith.constant 0 : i32
    return %1, %c0_i32, %c0_i32_0, %c0_i32_1 : i32, i32, i32, i32
  }
  func.func @transform_1(%arg0: i32, %arg1: i32) -> (i32, i32) {
    %c0_i32 = arith.constant 0 : i32
    %c0_i32_0 = arith.constant 0 : i32
    %c0_i32_1 = arith.constant 0 : i32
    return %c0_i32, %c0_i32_0 : i32, i32
  }
  func.func @transform_2(%arg0: i32, %arg1: i32) -> (i32, i32) {
    %c0_i32 = arith.constant 0 : i32
    %c0_i32_0 = arith.constant 0 : i32
    %c0_i32_1 = arith.constant 0 : i32
    return %c0_i32, %c0_i32_0 : i32, i32
  }
  func.func @transform_3(%arg0: i32, %arg1: i32) -> (i32, i32, i32) {
    %c2_i32 = arith.constant 2 : i32
    %0 = arith.muli %arg0, %c2_i32 : i32
    %1 = arith.addi %0, %arg1 : i32
    %c0_i32 = arith.constant 0 : i32
    %c0_i32_0 = arith.constant 0 : i32
    %c0_i32_1 = arith.constant 0 : i32
    return %1, %c0_i32, %c0_i32_0 : i32, i32, i32
  }
}

</mosaic_0001>

<llo_original>
// kernel: tpu_custom_call.1
$region0: #{tpu_custom_call.1}
  #allocation0 [shape = 'u32[]', space=smem, size = 0x4, offset = 0x4, fixed_abs, tag = 'smem constant byte address 0x4 - core index']
  #allocation1 [shape = 'u32[144,128]{1,0:T(1,128)}', space=vmem, size = 0x12000, scoped, tag = 'internal scratch']
  #allocation2 [shape = 'f32[8,16,36]{2,1,0:T(8,128)}', space=vmem, size = 0x10000, scoped, tag = 'scratch operand']
  %s0 = inlined_call_operand.vmem [shape: f32[4,10,18,4], index: 0, kind: input, shape index: {}]
  %s1 = inlined_call_operand.vmem [shape: f32[36,8], index: 1, kind: input, shape index: {}]
  %s2 = inlined_call_operand.vmem [shape: f32[8,1], index: 2, kind: input, shape index: {}]
  %s3 = inlined_call_operand.hbm [shape: f32[4,8,128], index: 3, kind: output, shape index: {}]
  %s4 = sld [smem:[#allocation0]]
  $region45: #{tpu_custom_call.1} parent=0
    _
  %s6 = ssub.s32 1, %s4
  %s7 = scalar_select 0, %s6, %s4
  $region1: #{tpu_custom_call.1} parent=0
    #allocation3 [shape = 'u8[8192]{0}', space=vmem, size = 0x2000, scoped, tag = 'output window, operand 0']
    #allocation4 [shape = 's32[2]{0}', space=sflag, size = 0x8, scoped, tag = 'scoped memory for tpu_custom_call.1']
    %8 = vsyncpa [#allocation4], 0
    %s9 = scalar_lea.sflag [#allocation4], 1
    %10 = vsyncpa %s9, 0
    loop: start=0, step=1, limit=6
    $region2: #{tpu_custom_call.1} parent=1 // loop_pre_header
      _
    $region3: #{tpu_custom_call.1} parent=1 // loop_header
      %s12 = sphi 0, %s16
      %p13 = scmp.ge.s32.totalorder %s12, 6
      %s19 = sphi 0, %s31
      %s20 = sphi 0, %s27
      %s21 = sphi 0, %s19
      %s22 = sphi 0, %s20
      %s23 = sphi 0, %s21
      %s24 = sphi 0, %s22
      %s38 = sphi 0, %s40
      %s41 = sphi 0, %s38
      %s42 = sphi 0, %s41
      %s58 = sphi 0, %s42
      %s62 = sphi 0, %s62
      %s64 = sphi 0, %s62
      %s65 = sphi 0, %s64
      %s79 = sphi 0, %s65
      %s83 = sphi 0, %s83
      %s85 = sphi 0, %s83
      %s86 = sphi 0, %s85
      %s100 = sphi 0, %s86
      %s110 = sphi 0, %s112
      %s113 = sphi 0, %s110
      %s114 = sphi 0, %s113
      %s130 = sphi 0, %s114
    $region4: #{tpu_custom_call.1} parent=1 // loop_header_branch
      %15 = sbr.rel (%p13) target = $region8
    $region5: #{tpu_custom_call.1} parent=1 // loop_body
      %s17 = ssub.s32 %s12, 1
      %s18 = ssub.s32 %s12, 2
      %s25 = sadd.s32 1, %s20
      %p26 = scmp.ge.s32.totalorder %s25, 2
      %s27 = scalar_select %p26, 0, %s25
      %s28 = sadd.s32 1, %s19
      %s29 = scalar_select %p26, %s28, %s19
      %p30 = scmp.ge.s32.totalorder %s29, 2
      %s31 = scalar_select %p30, 0, %s29
      %s32 = smul.u32 %s19, 2
      %s33 = sadd.s32 %s32, %s20
      %s34 = smul.u32 %s31, 2
      %s35 = sadd.s32 %s34, %s27
      %s36 = ssub.s32 %s33, %s35
      %p37 = scmp.eq.s32.totalorder %s36, 0
      %s39 = sadd.s32 %s38, 1
      %s40 = scalar_select %p37, %s38, %s39
      %p43 = pneg %p37
      %p44 = scmp.eq.s32.totalorder %s12, 3
      %p45 = por %p43, %p44
      %p46 = scmp.ne.s32.totalorder %s38, %s41
      %p47 = scmp.eq.s32.totalorder %s12, 0
      %p48 = por %p46, %p47
      %p49 = scmp.ne.s32.totalorder %s38, %s41
      %p50 = scmp.eq.s32.totalorder %s17, 3
      %p51 = por %p49, %p50
      %p52 = scmp.ne.s32.totalorder %s41, %s42
      %p53 = scmp.eq.s32.totalorder %s17, 0
      %p54 = por %p52, %p53
      %p55 = scmp.ne.s32.totalorder %s41, %s42
      %p56 = scmp.eq.s32.totalorder %s18, 3
      %p57 = por %p55, %p56
      %p59 = scmp.ne.s32.totalorder %s42, %s58
      %p60 = scmp.eq.s32.totalorder %s18, 0
      %p61 = por %p59, %p60
      %s63 = sadd.s32 %s62, 1
      %p66 = scmp.eq.s32.totalorder %s12, 3
      %p67 = scmp.ne.s32.totalorder %s62, %s64
      %p68 = scmp.eq.s32.totalorder %s12, 0
      %p69 = por %p67, %p68
      %p70 = scmp.ne.s32.totalorder %s62, %s64
      %p71 = scmp.eq.s32.totalorder %s17, 3
      %p72 = por %p70, %p71
      %p73 = scmp.ne.s32.totalorder %s64, %s65
      %p74 = scmp.eq.s32.totalorder %s17, 0
      %p75 = por %p73, %p74
      %p76 = scmp.ne.s32.totalorder %s64, %s65
      %p77 = scmp.eq.s32.totalorder %s18, 3
      %p78 = por %p76, %p77
      %p80 = scmp.ne.s32.totalorder %s65, %s79
      %p81 = scmp.eq.s32.totalorder %s18, 0
      %p82 = por %p80, %p81
      %s84 = sadd.s32 %s83, 1
      %p87 = scmp.eq.s32.totalorder %s12, 3
      %p88 = scmp.ne.s32.totalorder %s83, %s85
      %p89 = scmp.eq.s32.totalorder %s12, 0
      %p90 = por %p88, %p89
      %p91 = scmp.ne.s32.totalorder %s83, %s85
      %p92 = scmp.eq.s32.totalorder %s17, 3
      %p93 = por %p91, %p92
      %p94 = scmp.ne.s32.totalorder %s85, %s86
      %p95 = scmp.eq.s32.totalorder %s17, 0
      %p96 = por %p94, %p95
      %p97 = scmp.ne.s32.totalorder %s85, %s86
      %p98 = scmp.eq.s32.totalorder %s18, 3
      %p99 = por %p97, %p98
      %p101 = scmp.ne.s32.totalorder %s86, %s100
      %p102 = scmp.eq.s32.totalorder %s18, 0
      %p103 = por %p101, %p102
      %s104 = smul.u32 %s19, 2
      %s105 = sadd.s32 %s104, %s20
      %s106 = smul.u32 %s31, 2
      %s107 = sadd.s32 %s106, %s27
      %s108 = ssub.s32 %s105, %s107
      %p109 = scmp.eq.s32.totalorder %s108, 0
      %s111 = sadd.s32 %s110, 1
      %s112 = scalar_select %p109, %s110, %s111
      %p115 = pneg %p109
      %p116 = scmp.eq.s32.totalorder %s12, 3
      %p117 = por %p115, %p116
      %p118 = scmp.ne.s32.totalorder %s110, %s113
      %p119 = scmp.eq.s32.totalorder %s12, 0
      %p120 = por %p118, %p119
      %p121 = scmp.ne.s32.totalorder %s110, %s113
      %p122 = scmp.eq.s32.totalorder %s17, 3
      %p123 = por %p121, %p122
      %p124 = scmp.ne.s32.totalorder %s113, %s114
      %p125 = scmp.eq.s32.totalorder %s17, 0
      %p126 = por %p124, %p125
      %p127 = scmp.ne.s32.totalorder %s113, %s114
      %p128 = scmp.eq.s32.totalorder %s18, 3
      %p129 = por %p127, %p128
      %p131 = scmp.ne.s32.totalorder %s114, %s130
      %p132 = scmp.eq.s32.totalorder %s18, 0
      %p133 = por %p131, %p132
      %p134 = scmp.le.s32.totalorder 1, %s12
      %p135 = scmp.lt.s32.totalorder %s12, 5
      %p136 = pnand %p134, %p135
      %p137 = pneg %p136
      // Predicated region
      $region9: #{tpu_custom_call.1} parent=5 // pred_check
        _
      $region10: #{tpu_custom_call.1} parent=5 // pred_check_branch
        %139 = sbr.rel (%p136) target = $region12
      $region11: #{tpu_custom_call.1} parent=5 // pred_region
        %s140 = ssub.s32 %s12, 1
        // Predicated region
        $region13: #{tpu_custom_call.1} parent=11 // pred_check
          %p141 = pneg %p75
        $region14: #{tpu_custom_call.1} parent=11 // pred_check_branch
          %143 = sbr.rel (%p141) target = $region16
        $region15: #{tpu_custom_call.1} parent=11 // pred_region
          _
        $region16: #{tpu_custom_call.1} parent=11 // pred_fallthru
          _
        // Predicated region
        $region17: #{tpu_custom_call.1} parent=11 // pred_check
          %p144 = pneg %p96
        $region18: #{tpu_custom_call.1} parent=11 // pred_check_branch
          %146 = sbr.rel (%p144) target = $region20
        $region19: #{tpu_custom_call.1} parent=11 // pred_region
          _
        $region20: #{tpu_custom_call.1} parent=11 // pred_fallthru
          _
      $region12: #{tpu_custom_call.1} parent=5 // pred_fallthru
        _
      %p147 = scmp.lt.s32.totalorder %s12, 4
      // Predicated region
      $region21: #{tpu_custom_call.1} parent=5 // pred_check
        %p148 = pneg %p147
      $region22: #{tpu_custom_call.1} parent=5 // pred_check_branch
        %150 = sbr.rel (%p148) target = $region24
      $region23: #{tpu_custom_call.1} parent=5 // pred_region
        // Predicated region
        $region25: #{tpu_custom_call.1} parent=23 // pred_check
          %p151 = pneg %p48
        $region26: #{tpu_custom_call.1} parent=23 // pred_check_branch
          %153 = sbr.rel (%p151) target = $region28
        $region27: #{tpu_custom_call.1} parent=23 // pred_region
          %s154 = smul.u32 %s19, 2
          %s155 = sadd.s32 %s154, %s20
          %p156 = scmp.lt.s32.totalorder %s155, 3
          %s157 = scalar_select %p156, %s155, 3
          %s158 = smul.addr %s157, 30
          %s159 = smul.addr %s158, 8
          %s160 = scalar_lea.vmem %s0, %s159
          %s161 = smul.u32 %s19, 2
          %s162 = sadd.s32 %s161, %s20
        $region28: #{tpu_custom_call.1} parent=23 // pred_fallthru
          _
      $region24: #{tpu_custom_call.1} parent=5 // pred_fallthru
        _
      %p163 = scmp.le.s32.totalorder 1, %s12
      %p164 = scmp.lt.s32.totalorder %s12, 5
      %p165 = pnand %p163, %p164
      %p166 = pneg %p165
      // Predicated region
      $region29: #{tpu_custom_call.1} parent=5 // pred_check
        _
      $region30: #{tpu_custom_call.1} parent=5 // pred_check_branch
        %168 = sbr.rel (%p165) target = $region32
      $region31: #{tpu_custom_call.1} parent=5 // pred_region
        %s169 = ssub.s32 %s12, 1
        %s170 = smul.u32 %s21, 2
        %s171 = sadd.s32 %s170, %s22
        %p172 = scmp.lt.s32.totalorder %s171, 3
        %s173 = scalar_select %p172, %s171, 3
        %s174 = smul.addr %s173, 30
        %s175 = smul.addr %s174, 8
        %s176 = scalar_lea.vmem %s0, %s175
        %p177 = pneg %p54
        %p178 = pneg %p51
        %p179 = pneg %p75
        %p180 = pneg %p72
        %p181 = pneg %p96
        %p182 = pneg %p93
        %p183 = pneg %p126
        %p184 = pneg %p123
        %s185 = sand.u32 %s113, 1
        %s186 = scalar_lea.sflag [#allocation4], %s185
        %s187 = sand.u32 %s113, 1
        %s188 = smul.addr %s187, 8
        %s189 = scalar_lea.vmem [#allocation3], %s188
        %s190 = smul.u32 %s21, 2
        %s191 = sadd.s32 %s190, %s22
        %p192 = scmp.lt.s32.totalorder %s191, 3
        %s193 = scalar_select %p192, %s191, 3
        %s194 = smul.addr %s193, 30
        %s195 = smul.addr %s194, 8
        %s196 = scalar_lea.vmem %s0, %s195
        %s197 = smul.u32 %s21, 2
        %s198 = sadd.s32 %s197, %s22
        %s199 = smul.u32 %s21, 2
        %s200 = sadd.s32 %s199, %s22
        %v201 = vld [vmem:[%s196] sm:$0xff]
        %v202 = vld [vmem:[%s196 + $0x8] sm:$0xff]
        %v203 = vld [vmem:[%s196 + $0x18] sm:$0xff]
        %v204 = vld [vmem:[%s196 + $0x20] sm:$0xff]
        %v205 = vld [vmem:[%s196 + $0x30] sm:$0xff]
        %v206 = vld [vmem:[%s196 + $0x38] sm:$0xff]
        %v207 = vld [vmem:[%s196 + $0x48] sm:$0xff]
        %v208 = vld [vmem:[%s196 + $0x50] sm:$0xff]
        %v209 = vld [vmem:[%s196 + $0x60] sm:$0xff]
        %v210 = vld [vmem:[%s196 + $0x68] sm:$0xff]
        %v211 = vld [vmem:[%s196 + $0x78] sm:$0xff]
        %v212 = vld [vmem:[%s196 + $0x80] sm:$0xff]
        %v213 = vld [vmem:[%s196 + $0x90] sm:$0xff]
        %v214 = vld [vmem:[%s196 + $0x98] sm:$0xff]
        %v215 = vld [vmem:[%s196 + $0xa8] sm:$0xff]
        %v216 = vld [vmem:[%s196 + $0xb0] sm:$0xff]
        %vm217 = vcmask 31744
        %218 = vst.msk [vmem:[#allocation2] sm:$0xff] %vm217, %v201
        %219 = vst.msk [vmem:[#allocation2 + $0x8] sm:$0xff] %vm217, %v202
        %220 = vst.msk [vmem:[#allocation2 + $0x10] sm:$0xff] %vm217, %v203
        %221 = vst.msk [vmem:[#allocation2 + $0x18] sm:$0xff] %vm217, %v204
        %222 = vst.msk [vmem:[#allocation2 + $0x20] sm:$0xff] %vm217, %v205
        %223 = vst.msk [vmem:[#allocation2 + $0x28] sm:$0xff] %vm217, %v206
        %224 = vst.msk [vmem:[#allocation2 + $0x30] sm:$0xff] %vm217, %v207
        %225 = vst.msk [vmem:[#allocation2 + $0x38] sm:$0xff] %vm217, %v208
        %226 = vst.msk [vmem:[#allocation2 + $0x40] sm:$0xff] %vm217, %v209
        %227 = vst.msk [vmem:[#allocation2 + $0x48] sm:$0xff] %vm217, %v210
        %228 = vst.msk [vmem:[#allocation2 + $0x50] sm:$0xff] %vm217, %v211
        %229 = vst.msk [vmem:[#allocation2 + $0x58] sm:$0xff] %vm217, %v212
        %230 = vst.msk [vmem:[#allocation2 + $0x60] sm:$0xff] %vm217, %v213
        %231 = vst.msk [vmem:[#allocation2 + $0x68] sm:$0xff] %vm217, %v214
        %232 = vst.msk [vmem:[#allocation2 + $0x70] sm:$0xff] %vm217, %v215
        %233 = vst.msk [vmem:[#allocation2 + $0x78] sm:$0xff] %vm217, %v216
        %v234 = vld [vmem:[%s196 + $0x1] sm:$0xff]
        %v235 = vld [vmem:[%s196 + $0x9] sm:$0xff]
        %v236 = vld [vmem:[%s196 + $0x19] sm:$0xff]
        %v237 = vld [vmem:[%s196 + $0x21] sm:$0xff]
        %v238 = vld [vmem:[%s196 + $0x31] sm:$0xff]
        %v239 = vld [vmem:[%s196 + $0x39] sm:$0xff]
        %v240 = vld [vmem:[%s196 + $0x49] sm:$0xff]
        %v241 = vld [vmem:[%s196 + $0x51] sm:$0xff]
        %v242 = vld [vmem:[%s196 + $0x61] sm:$0xff]
        %v243 = vld [vmem:[%s196 + $0x69] sm:$0xff]
        %v244 = vld [vmem:[%s196 + $0x79] sm:$0xff]
        %v245 = vld [vmem:[%s196 + $0x81] sm:$0xff]
        %v246 = vld [vmem:[%s196 + $0x91] sm:$0xff]
        %v247 = vld [vmem:[%s196 + $0x99] sm:$0xff]
        %v248 = vld [vmem:[%s196 + $0xa9] sm:$0xff]
        %v249 = vld [vmem:[%s196 + $0xb1] sm:$0xff]
        %266 = vrot.lane.b32.xlu0 %v234, 4
        %v267 = vpop.permute.xlu0 %266
        %268 = vrot.lane.b32.xlu0 %v235, 4
        %v269 = vpop.permute.xlu0 %268
        %270 = vrot.lane.b32.xlu0 %v236, 4
        %v271 = vpop.permute.xlu0 %270
        %272 = vrot.lane.b32.xlu0 %v237, 4
        %v273 = vpop.permute.xlu0 %272
        %274 = vrot.lane.b32.xlu0 %v238, 4
        %v275 = vpop.permute.xlu0 %274
        %276 = vrot.lane.b32.xlu0 %v239, 4
        %v277 = vpop.permute.xlu0 %276
        %278 = vrot.lane.b32.xlu0 %v240, 4
        %v279 = vpop.permute.xlu0 %278
        %280 = vrot.lane.b32.xlu0 %v241, 4
        %v281 = vpop.permute.xlu0 %280
        %282 = vrot.lane.b32.xlu0 %v242, 4
        %v283 = vpop.permute.xlu0 %282
        %284 = vrot.lane.b32.xlu0 %v243, 4
        %v285 = vpop.permute.xlu0 %284
        %286 = vrot.lane.b32.xlu0 %v244, 4
        %v287 = vpop.permute.xlu0 %286
        %288 = vrot.lane.b32.xlu0 %v245, 4
        %v289 = vpop.permute.xlu0 %288
        %290 = vrot.lane.b32.xlu0 %v246, 4
        %v291 = vpop.permute.xlu0 %290
        %292 = vrot.lane.b32.xlu0 %v247, 4
        %v293 = vpop.permute.xlu0 %292
        %294 = vrot.lane.b32.xlu0 %v248, 4
        %v295 = vpop.permute.xlu0 %294
        %296 = vrot.lane.b32.xlu0 %v249, 4
        %v297 = vpop.permute.xlu0 %296
        %vm314 = vcmask 64544
        %315 = vst.msk [vmem:[#allocation2] sm:$0xff] %vm314, %v267
        %316 = vst.msk [vmem:[#allocation2 + $0x8] sm:$0xff] %vm314, %v269
        %317 = vst.msk [vmem:[#allocation2 + $0x10] sm:$0xff] %vm314, %v271
        %318 = vst.msk [vmem:[#allocation2 + $0x18] sm:$0xff] %vm314, %v273
        %319 = vst.msk [vmem:[#allocation2 + $0x20] sm:$0xff] %vm314, %v275
        %320 = vst.msk [vmem:[#allocation2 + $0x28] sm:$0xff] %vm314, %v277
        %321 = vst.msk [vmem:[#allocation2 + $0x30] sm:$0xff] %vm314, %v279
        %322 = vst.msk [vmem:[#allocation2 + $0x38] sm:$0xff] %vm314, %v281
        %323 = vst.msk [vmem:[#allocation2 + $0x40] sm:$0xff] %vm314, %v283
        %324 = vst.msk [vmem:[#allocation2 + $0x48] sm:$0xff] %vm314, %v285
        %325 = vst.msk [vmem:[#allocation2 + $0x50] sm:$0xff] %vm314, %v287
        %326 = vst.msk [vmem:[#allocation2 + $0x58] sm:$0xff] %vm314, %v289
        %327 = vst.msk [vmem:[#allocation2 + $0x60] sm:$0xff] %vm314, %v291
        %328 = vst.msk [vmem:[#allocation2 + $0x68] sm:$0xff] %vm314, %v293
        %329 = vst.msk [vmem:[#allocation2 + $0x70] sm:$0xff] %vm314, %v295
        %330 = vst.msk [vmem:[#allocation2 + $0x78] sm:$0xff] %vm314, %v297
        %v331 = vld [vmem:[%s196 + $0x2] sm:$0xff]
        %v332 = vld [vmem:[%s196 + $0xa] sm:$0xff]
        %v333 = vld [vmem:[%s196 + $0x1a] sm:$0xff]
        %v334 = vld [vmem:[%s196 + $0x22] sm:$0xff]
        %v335 = vld [vmem:[%s196 + $0x32] sm:$0xff]
        %v336 = vld [vmem:[%s196 + $0x3a] sm:$0xff]
        %v337 = vld [vmem:[%s196 + $0x4a] sm:$0xff]
        %v338 = vld [vmem:[%s196 + $0x52] sm:$0xff]
        %v339 = vld [vmem:[%s196 + $0x62] sm:$0xff]
        %v340 = vld [vmem:[%s196 + $0x6a] sm:$0xff]
        %v341 = vld [vmem:[%s196 + $0x7a] sm:$0xff]
        %v342 = vld [vmem:[%s196 + $0x82] sm:$0xff]
        %v343 = vld [vmem:[%s196 + $0x92] sm:$0xff]
        %v344 = vld [vmem:[%s196 + $0x9a] sm:$0xff]
        %v345 = vld [vmem:[%s196 + $0xaa] sm:$0xff]
        %v346 = vld [vmem:[%s196 + $0xb2] sm:$0xff]
        %363 = vrot.lane.b32.xlu0 %v331, 8
        %v364 = vpop.permute.xlu0 %363
        %365 = vrot.lane.b32.xlu0 %v332, 8
        %v366 = vpop.permute.xlu0 %365
        %367 = vrot.lane.b32.xlu0 %v333, 8
        %v368 = vpop.permute.xlu0 %367
        %369 = vrot.lane.b32.xlu0 %v334, 8
        %v370 = vpop.permute.xlu0 %369
        %371 = vrot.lane.b32.xlu0 %v335, 8
        %v372 = vpop.permute.xlu0 %371
        %373 = vrot.lane.b32.xlu0 %v336, 8
        %v374 = vpop.permute.xlu0 %373
        %375 = vrot.lane.b32.xlu0 %v337, 8
        %v376 = vpop.permute.xlu0 %375
        %377 = vrot.lane.b32.xlu0 %v338, 8
        %v378 = vpop.permute.xlu0 %377
        %379 = vrot.lane.b32.xlu0 %v339, 8
        %v380 = vpop.permute.xlu0 %379
        %381 = vrot.lane.b32.xlu0 %v340, 8
        %v382 = vpop.permute.xlu0 %381
        %383 = vrot.lane.b32.xlu0 %v341, 8
        %v384 = vpop.permute.xlu0 %383
        %385 = vrot.lane.b32.xlu0 %v342, 8
        %v386 = vpop.permute.xlu0 %385
        %387 = vrot.lane.b32.xlu0 %v343, 8
        %v388 = vpop.permute.xlu0 %387
        %389 = vrot.lane.b32.xlu0 %v344, 8
        %v390 = vpop.permute.xlu0 %389
        %391 = vrot.lane.b32.xlu0 %v345, 8
        %v392 = vpop.permute.xlu0 %391
        %393 = vrot.lane.b32.xlu0 %v346, 8
        %v394 = vpop.permute.xlu0 %393
        %vm411 = vcmask 97344
        %412 = vst.msk [vmem:[#allocation2] sm:$0xff] %vm411, %v364
        %413 = vst.msk [vmem:[#allocation2 + $0x8] sm:$0xff] %vm411, %v366
        %414 = vst.msk [vmem:[#allocation2 + $0x10] sm:$0xff] %vm411, %v368
        %415 = vst.msk [vmem:[#allocation2 + $0x18] sm:$0xff] %vm411, %v370
        %416 = vst.msk [vmem:[#allocation2 + $0x20] sm:$0xff] %vm411, %v372
        %417 = vst.msk [vmem:[#allocation2 + $0x28] sm:$0xff] %vm411, %v374
        %418 = vst.msk [vmem:[#allocation2 + $0x30] sm:$0xff] %vm411, %v376
        %419 = vst.msk [vmem:[#allocation2 + $0x38] sm:$0xff] %vm411, %v378
        %420 = vst.msk [vmem:[#allocation2 + $0x40] sm:$0xff] %vm411, %v380
        %421 = vst.msk [vmem:[#allocation2 + $0x48] sm:$0xff] %vm411, %v382
        %422 = vst.msk [vmem:[#allocation2 + $0x50] sm:$0xff] %vm411, %v384
        %423 = vst.msk [vmem:[#allocation2 + $0x58] sm:$0xff] %vm411, %v386
        %424 = vst.msk [vmem:[#allocation2 + $0x60] sm:$0xff] %vm411, %v388
        %425 = vst.msk [vmem:[#allocation2 + $0x68] sm:$0xff] %vm411, %v390
        %426 = vst.msk [vmem:[#allocation2 + $0x70] sm:$0xff] %vm411, %v392
        %427 = vst.msk [vmem:[#allocation2 + $0x78] sm:$0xff] %vm411, %v394
        %s428 = scalar_lea.vmem %s196, 24
        %v429 = vld [vmem:[%s428] sm:$0xff]
        %v430 = vld [vmem:[%s428 + $0x8] sm:$0xff]
        %v431 = vld [vmem:[%s428 + $0x18] sm:$0xff]
        %v432 = vld [vmem:[%s428 + $0x20] sm:$0xff]
        %v433 = vld [vmem:[%s428 + $0x30] sm:$0xff]
        %v434 = vld [vmem:[%s428 + $0x38] sm:$0xff]
        %v435 = vld [vmem:[%s428 + $0x48] sm:$0xff]
        %v436 = vld [vmem:[%s428 + $0x50] sm:$0xff]
        %v437 = vld [vmem:[%s428 + $0x60] sm:$0xff]
        %v438 = vld [vmem:[%s428 + $0x68] sm:$0xff]
        %v439 = vld [vmem:[%s428 + $0x78] sm:$0xff]
        %v440 = vld [vmem:[%s428 + $0x80] sm:$0xff]
        %v441 = vld [vmem:[%s428 + $0x90] sm:$0xff]
        %v442 = vld [vmem:[%s428 + $0x98] sm:$0xff]
        %v443 = vld [vmem:[%s428 + $0xa8] sm:$0xff]
        %v444 = vld [vmem:[%s428 + $0xb0] sm:$0xff]
        %461 = vrot.lane.b32.xlu0 %v429, 12
        %v462 = vpop.permute.xlu0 %461
        %463 = vrot.lane.b32.xlu0 %v430, 12
        %v464 = vpop.permute.xlu0 %463
        %465 = vrot.lane.b32.xlu0 %v431, 12
        %v466 = vpop.permute.xlu0 %465
        %467 = vrot.lane.b32.xlu0 %v432, 12
        %v468 = vpop.permute.xlu0 %467
        %469 = vrot.lane.b32.xlu0 %v433, 12
        %v470 = vpop.permute.xlu0 %469
        %471 = vrot.lane.b32.xlu0 %v434, 12
        %v472 = vpop.permute.xlu0 %471
        %473 = vrot.lane.b32.xlu0 %v435, 12
        %v474 = vpop.permute.xlu0 %473
        %475 = vrot.lane.b32.xlu0 %v436, 12
        %v476 = vpop.permute.xlu0 %475
        %477 = vrot.lane.b32.xlu0 %v437, 12
        %v478 = vpop.permute.xlu0 %477
        %479 = vrot.lane.b32.xlu0 %v438, 12
        %v480 = vpop.permute.xlu0 %479
        %481 = vrot.lane.b32.xlu0 %v439, 12
        %v482 = vpop.permute.xlu0 %481
        %483 = vrot.lane.b32.xlu0 %v440, 12
        %v484 = vpop.permute.xlu0 %483
        %485 = vrot.lane.b32.xlu0 %v441, 12
        %v486 = vpop.permute.xlu0 %485
        %487 = vrot.lane.b32.xlu0 %v442, 12
        %v488 = vpop.permute.xlu0 %487
        %489 = vrot.lane.b32.xlu0 %v443, 12
        %v490 = vpop.permute.xlu0 %489
        %491 = vrot.lane.b32.xlu0 %v444, 12
        %v492 = vpop.permute.xlu0 %491
        %vm509 = vcmask 130144
        %510 = vst.msk [vmem:[#allocation2] sm:$0xff] %vm509, %v462
        %511 = vst.msk [vmem:[#allocation2 + $0x8] sm:$0xff] %vm509, %v464
        %512 = vst.msk [vmem:[#allocation2 + $0x10] sm:$0xff] %vm509, %v466
        %513 = vst.msk [vmem:[#allocation2 + $0x18] sm:$0xff] %vm509, %v468
        %514 = vst.msk [vmem:[#allocation2 + $0x20] sm:$0xff] %vm509, %v470
        %515 = vst.msk [vmem:[#allocation2 + $0x28] sm:$0xff] %vm509, %v472
        %516 = vst.msk [vmem:[#allocation2 + $0x30] sm:$0xff] %vm509, %v474
        %517 = vst.msk [vmem:[#allocation2 + $0x38] sm:$0xff] %vm509, %v476
        %518 = vst.msk [vmem:[#allocation2 + $0x40] sm:$0xff] %vm509, %v478
        %519 = vst.msk [vmem:[#allocation2 + $0x48] sm:$0xff] %vm509, %v480
        %520 = vst.msk [vmem:[#allocation2 + $0x50] sm:$0xff] %vm509, %v482
        %521 = vst.msk [vmem:[#allocation2 + $0x58] sm:$0xff] %vm509, %v484
        %522 = vst.msk [vmem:[#allocation2 + $0x60] sm:$0xff] %vm509, %v486
        %523 = vst.msk [vmem:[#allocation2 + $0x68] sm:$0xff] %vm509, %v488
        %524 = vst.msk [vmem:[#allocation2 + $0x70] sm:$0xff] %vm509, %v490
        %525 = vst.msk [vmem:[#allocation2 + $0x78] sm:$0xff] %vm509, %v492
        %v526 = vld [vmem:[%s428 + $0x1] sm:$0xff]
        %v527 = vld [vmem:[%s428 + $0x9] sm:$0xff]
        %v528 = vld [vmem:[%s428 + $0x19] sm:$0xff]
        %v529 = vld [vmem:[%s428 + $0x21] sm:$0xff]
        %v530 = vld [vmem:[%s428 + $0x31] sm:$0xff]
        %v531 = vld [vmem:[%s428 + $0x39] sm:$0xff]
        %v532 = vld [vmem:[%s428 + $0x49] sm:$0xff]
        %v533 = vld [vmem:[%s428 + $0x51] sm:$0xff]
        %v534 = vld [vmem:[%s428 + $0x61] sm:$0xff]
        %v535 = vld [vmem:[%s428 + $0x69] sm:$0xff]
        %v536 = vld [vmem:[%s428 + $0x79] sm:$0xff]
        %v537 = vld [vmem:[%s428 + $0x81] sm:$0xff]
        %v538 = vld [vmem:[%s428 + $0x91] sm:$0xff]
        %v539 = vld [vmem:[%s428 + $0x99] sm:$0xff]
        %v540 = vld [vmem:[%s428 + $0xa9] sm:$0xff]
        %v541 = vld [vmem:[%s428 + $0xb1] sm:$0xff]
        %558 = vrot.lane.b32.xlu0 %v526, 16
        %v559 = vpop.permute.xlu0 %558
        %560 = vrot.lane.b32.xlu0 %v527, 16
        %v561 = vpop.permute.xlu0 %560
        %562 = vrot.lane.b32.xlu0 %v528, 16
        %v563 = vpop.permute.xlu0 %562
        %564 = vrot.lane.b32.xlu0 %v529, 16
        %v565 = vpop.permute.xlu0 %564
        %566 = vrot.lane.b32.xlu0 %v530, 16
        %v567 = vpop.permute.xlu0 %566
        %568 = vrot.lane.b32.xlu0 %v531, 16
        %v569 = vpop.permute.xlu0 %568
        %570 = vrot.lane.b32.xlu0 %v532, 16
        %v571 = vpop.permute.xlu0 %570
        %572 = vrot.lane.b32.xlu0 %v533, 16
        %v573 = vpop.permute.xlu0 %572
        %574 = vrot.lane.b32.xlu0 %v534, 16
        %v575 = vpop.permute.xlu0 %574
        %576 = vrot.lane.b32.xlu0 %v535, 16
        %v577 = vpop.permute.xlu0 %576
        %578 = vrot.lane.b32.xlu0 %v536, 16
        %v579 = vpop.permute.xlu0 %578
        %580 = vrot.lane.b32.xlu0 %v537, 16
        %v581 = vpop.permute.xlu0 %580
        %582 = vrot.lane.b32.xlu0 %v538, 16
        %v583 = vpop.permute.xlu0 %582
        %584 = vrot.lane.b32.xlu0 %v539, 16
        %v585 = vpop.permute.xlu0 %584
        %586 = vrot.lane.b32.xlu0 %v540, 16
        %v587 = vpop.permute.xlu0 %586
        %588 = vrot.lane.b32.xlu0 %v541, 16
        %v589 = vpop.permute.xlu0 %588
        %vm606 = vcmask 162944
        %607 = vst.msk [vmem:[#allocation2] sm:$0xff] %vm606, %v559
        %608 = vst.msk [vmem:[#allocation2 + $0x8] sm:$0xff] %vm606, %v561
        %609 = vst.msk [vmem:[#allocation2 + $0x10] sm:$0xff] %vm606, %v563
        %610 = vst.msk [vmem:[#allocation2 + $0x18] sm:$0xff] %vm606, %v565
        %611 = vst.msk [vmem:[#allocation2 + $0x20] sm:$0xff] %vm606, %v567
        %612 = vst.msk [vmem:[#allocation2 + $0x28] sm:$0xff] %vm606, %v569
        %613 = vst.msk [vmem:[#allocation2 + $0x30] sm:$0xff] %vm606, %v571
        %614 = vst.msk [vmem:[#allocation2 + $0x38] sm:$0xff] %vm606, %v573
        %615 = vst.msk [vmem:[#allocation2 + $0x40] sm:$0xff] %vm606, %v575
        %616 = vst.msk [vmem:[#allocation2 + $0x48] sm:$0xff] %vm606, %v577
        %617 = vst.msk [vmem:[#allocation2 + $0x50] sm:$0xff] %vm606, %v579
        %618 = vst.msk [vmem:[#allocation2 + $0x58] sm:$0xff] %vm606, %v581
        %619 = vst.msk [vmem:[#allocation2 + $0x60] sm:$0xff] %vm606, %v583
        %620 = vst.msk [vmem:[#allocation2 + $0x68] sm:$0xff] %vm606, %v585
        %621 = vst.msk [vmem:[#allocation2 + $0x70] sm:$0xff] %vm606, %v587
        %622 = vst.msk [vmem:[#allocation2 + $0x78] sm:$0xff] %vm606, %v589
        %v623 = vld [vmem:[%s428 + $0x2] sm:$0xff]
        %v624 = vld [vmem:[%s428 + $0xa] sm:$0xff]
        %v625 = vld [vmem:[%s428 + $0x1a] sm:$0xff]
        %v626 = vld [vmem:[%s428 + $0x22] sm:$0xff]
        %v627 = vld [vmem:[%s428 + $0x32] sm:$0xff]
        %v628 = vld [vmem:[%s428 + $0x3a] sm:$0xff]
        %v629 = vld [vmem:[%s428 + $0x4a] sm:$0xff]
        %v630 = vld [vmem:[%s428 + $0x52] sm:$0xff]
        %v631 = vld [vmem:[%s428 + $0x62] sm:$0xff]
        %v632 = vld [vmem:[%s428 + $0x6a] sm:$0xff]
        %v633 = vld [vmem:[%s428 + $0x7a] sm:$0xff]
        %v634 = vld [vmem:[%s428 + $0x82] sm:$0xff]
        %v635 = vld [vmem:[%s428 + $0x92] sm:$0xff]
        %v636 = vld [vmem:[%s428 + $0x9a] sm:$0xff]
        %v637 = vld [vmem:[%s428 + $0xaa] sm:$0xff]
        %v638 = vld [vmem:[%s428 + $0xb2] sm:$0xff]
        %655 = vrot.lane.b32.xlu0 %v623, 20
        %v656 = vpop.permute.xlu0 %655
        %657 = vrot.lane.b32.xlu0 %v624, 20
        %v658 = vpop.permute.xlu0 %657
        %659 = vrot.lane.b32.xlu0 %v625, 20
        %v660 = vpop.permute.xlu0 %659
        %661 = vrot.lane.b32.xlu0 %v626, 20
        %v662 = vpop.permute.xlu0 %661
        %663 = vrot.lane.b32.xlu0 %v627, 20
        %v664 = vpop.permute.xlu0 %663
        %665 = vrot.lane.b32.xlu0 %v628, 20
        %v666 = vpop.permute.xlu0 %665
        %667 = vrot.lane.b32.xlu0 %v629, 20
        %v668 = vpop.permute.xlu0 %667
        %669 = vrot.lane.b32.xlu0 %v630, 20
        %v670 = vpop.permute.xlu0 %669
        %671 = vrot.lane.b32.xlu0 %v631, 20
        %v672 = vpop.permute.xlu0 %671
        %673 = vrot.lane.b32.xlu0 %v632, 20
        %v674 = vpop.permute.xlu0 %673
        %675 = vrot.lane.b32.xlu0 %v633, 20
        %v676 = vpop.permute.xlu0 %675
        %677 = vrot.lane.b32.xlu0 %v634, 20
        %v678 = vpop.permute.xlu0 %677
        %679 = vrot.lane.b32.xlu0 %v635, 20
        %v680 = vpop.permute.xlu0 %679
        %681 = vrot.lane.b32.xlu0 %v636, 20
        %v682 = vpop.permute.xlu0 %681
        %683 = vrot.lane.b32.xlu0 %v637, 20
        %v684 = vpop.permute.xlu0 %683
        %685 = vrot.lane.b32.xlu0 %v638, 20
        %v686 = vpop.permute.xlu0 %685
        %vm703 = vcmask 195744
        %704 = vst.msk [vmem:[#allocation2] sm:$0xff] %vm703, %v656
        %705 = vst.msk [vmem:[#allocation2 + $0x8] sm:$0xff] %vm703, %v658
        %706 = vst.msk [vmem:[#allocation2 + $0x10] sm:$0xff] %vm703, %v660
        %707 = vst.msk [vmem:[#allocation2 + $0x18] sm:$0xff] %vm703, %v662
        %708 = vst.msk [vmem:[#allocation2 + $0x20] sm:$0xff] %vm703, %v664
        %709 = vst.msk [vmem:[#allocation2 + $0x28] sm:$0xff] %vm703, %v666
        %710 = vst.msk [vmem:[#allocation2 + $0x30] sm:$0xff] %vm703, %v668
        %711 = vst.msk [vmem:[#allocation2 + $0x38] sm:$0xff] %vm703, %v670
        %712 = vst.msk [vmem:[#allocation2 + $0x40] sm:$0xff] %vm703, %v672
        %713 = vst.msk [vmem:[#allocation2 + $0x48] sm:$0xff] %vm703, %v674
        %714 = vst.msk [vmem:[#allocation2 + $0x50] sm:$0xff] %vm703, %v676
        %715 = vst.msk [vmem:[#allocation2 + $0x58] sm:$0xff] %vm703, %v678
        %716 = vst.msk [vmem:[#allocation2 + $0x60] sm:$0xff] %vm703, %v680
        %717 = vst.msk [vmem:[#allocation2 + $0x68] sm:$0xff] %vm703, %v682
        %718 = vst.msk [vmem:[#allocation2 + $0x70] sm:$0xff] %vm703, %v684
        %719 = vst.msk [vmem:[#allocation2 + $0x78] sm:$0xff] %vm703, %v686
        %s720 = scalar_lea.vmem %s196, 48
        %v721 = vld [vmem:[%s720] sm:$0xff]
        %v722 = vld [vmem:[%s720 + $0x8] sm:$0xff]
        %v723 = vld [vmem:[%s720 + $0x18] sm:$0xff]
        %v724 = vld [vmem:[%s720 + $0x20] sm:$0xff]
        %v725 = vld [vmem:[%s720 + $0x30] sm:$0xff]
        %v726 = vld [vmem:[%s720 + $0x38] sm:$0xff]
        %v727 = vld [vmem:[%s720 + $0x48] sm:$0xff]
        %v728 = vld [vmem:[%s720 + $0x50] sm:$0xff]
        %v729 = vld [vmem:[%s720 + $0x60] sm:$0xff]
        %v730 = vld [vmem:[%s720 + $0x68] sm:$0xff]
        %v731 = vld [vmem:[%s720 + $0x78] sm:$0xff]
        %v732 = vld [vmem:[%s720 + $0x80] sm:$0xff]
        %v733 = vld [vmem:[%s720 + $0x90] sm:$0xff]
        %v734 = vld [vmem:[%s720 + $0x98] sm:$0xff]
        %v735 = vld [vmem:[%s720 + $0xa8] sm:$0xff]
        %v736 = vld [vmem:[%s720 + $0xb0] sm:$0xff]
        %753 = vrot.lane.b32.xlu0 %v721, 24
        %v754 = vpop.permute.xlu0 %753
        %755 = vrot.lane.b32.xlu0 %v722, 24
        %v756 = vpop.permute.xlu0 %755
        %757 = vrot.lane.b32.xlu0 %v723, 24
        %v758 = vpop.permute.xlu0 %757
        %759 = vrot.lane.b32.xlu0 %v724, 24
        %v760 = vpop.permute.xlu0 %759
        %761 = vrot.lane.b32.xlu0 %v725, 24
        %v762 = vpop.permute.xlu0 %761
        %763 = vrot.lane.b32.xlu0 %v726, 24
        %v764 = vpop.permute.xlu0 %763
        %765 = vrot.lane.b32.xlu0 %v727, 24
        %v766 = vpop.permute.xlu0 %765
        %767 = vrot.lane.b32.xlu0 %v728, 24
        %v768 = vpop.permute.xlu0 %767
        %769 = vrot.lane.b32.xlu0 %v729, 24
        %v770 = vpop.permute.xlu0 %769
        %771 = vrot.lane.b32.xlu0 %v730, 24
        %v772 = vpop.permute.xlu0 %771
        %773 = vrot.lane.b32.xlu0 %v731, 24
        %v774 = vpop.permute.xlu0 %773
        %775 = vrot.lane.b32.xlu0 %v732, 24
        %v776 = vpop.permute.xlu0 %775
        %777 = vrot.lane.b32.xlu0 %v733, 24
        %v778 = vpop.permute.xlu0 %777
        %779 = vrot.lane.b32.xlu0 %v734, 24
        %v780 = vpop.permute.xlu0 %779
        %781 = vrot.lane.b32.xlu0 %v735, 24
        %v782 = vpop.permute.xlu0 %781
        %783 = vrot.lane.b32.xlu0 %v736, 24
        %v784 = vpop.permute.xlu0 %783
        %vm801 = vcmask 228544
        %802 = vst.msk [vmem:[#allocation2] sm:$0xff] %vm801, %v754
        %803 = vst.msk [vmem:[#allocation2 + $0x8] sm:$0xff] %vm801, %v756
        %804 = vst.msk [vmem:[#allocation2 + $0x10] sm:$0xff] %vm801, %v758
        %805 = vst.msk [vmem:[#allocation2 + $0x18] sm:$0xff] %vm801, %v760
        %806 = vst.msk [vmem:[#allocation2 + $0x20] sm:$0xff] %vm801, %v762
        %807 = vst.msk [vmem:[#allocation2 + $0x28] sm:$0xff] %vm801, %v764
        %808 = vst.msk [vmem:[#allocation2 + $0x30] sm:$0xff] %vm801, %v766
        %809 = vst.msk [vmem:[#allocation2 + $0x38] sm:$0xff] %vm801, %v768
        %810 = vst.msk [vmem:[#allocation2 + $0x40] sm:$0xff] %vm801, %v770
        %811 = vst.msk [vmem:[#allocation2 + $0x48] sm:$0xff] %vm801, %v772
        %812 = vst.msk [vmem:[#allocation2 + $0x50] sm:$0xff] %vm801, %v774
        %813 = vst.msk [vmem:[#allocation2 + $0x58] sm:$0xff] %vm801, %v776
        %814 = vst.msk [vmem:[#allocation2 + $0x60] sm:$0xff] %vm801, %v778
        %815 = vst.msk [vmem:[#allocation2 + $0x68] sm:$0xff] %vm801, %v780
        %816 = vst.msk [vmem:[#allocation2 + $0x70] sm:$0xff] %vm801, %v782
        %817 = vst.msk [vmem:[#allocation2 + $0x78] sm:$0xff] %vm801, %v784
        %v818 = vld [vmem:[%s720 + $0x1] sm:$0xff]
        %v819 = vld [vmem:[%s720 + $0x9] sm:$0xff]
        %v820 = vld [vmem:[%s720 + $0x19] sm:$0xff]
        %v821 = vld [vmem:[%s720 + $0x21] sm:$0xff]
        %v822 = vld [vmem:[%s720 + $0x31] sm:$0xff]
        %v823 = vld [vmem:[%s720 + $0x39] sm:$0xff]
        %v824 = vld [vmem:[%s720 + $0x49] sm:$0xff]
        %v825 = vld [vmem:[%s720 + $0x51] sm:$0xff]
        %v826 = vld [vmem:[%s720 + $0x61] sm:$0xff]
        %v827 = vld [vmem:[%s720 + $0x69] sm:$0xff]
        %v828 = vld [vmem:[%s720 + $0x79] sm:$0xff]
        %v829 = vld [vmem:[%s720 + $0x81] sm:$0xff]
        %v830 = vld [vmem:[%s720 + $0x91] sm:$0xff]
        %v831 = vld [vmem:[%s720 + $0x99] sm:$0xff]
        %v832 = vld [vmem:[%s720 + $0xa9] sm:$0xff]
        %v833 = vld [vmem:[%s720 + $0xb1] sm:$0xff]
        %850 = vrot.lane.b32.xlu0 %v818, 28
        %v851 = vpop.permute.xlu0 %850
        %852 = vrot.lane.b32.xlu0 %v819, 28
        %v853 = vpop.permute.xlu0 %852
        %854 = vrot.lane.b32.xlu0 %v820, 28
        %v855 = vpop.permute.xlu0 %854
        %856 = vrot.lane.b32.xlu0 %v821, 28
        %v857 = vpop.permute.xlu0 %856
        %858 = vrot.lane.b32.xlu0 %v822, 28
        %v859 = vpop.permute.xlu0 %858
        %860 = vrot.lane.b32.xlu0 %v823, 28
        %v861 = vpop.permute.xlu0 %860
        %862 = vrot.lane.b32.xlu0 %v824, 28
        %v863 = vpop.permute.xlu0 %862
        %864 = vrot.lane.b32.xlu0 %v825, 28
        %v865 = vpop.permute.xlu0 %864
        %866 = vrot.lane.b32.xlu0 %v826, 28
        %v867 = vpop.permute.xlu0 %866
        %868 = vrot.lane.b32.xlu0 %v827, 28
        %v869 = vpop.permute.xlu0 %868
        %870 = vrot.lane.b32.xlu0 %v828, 28
        %v871 = vpop.permute.xlu0 %870
        %872 = vrot.lane.b32.xlu0 %v829, 28
        %v873 = vpop.permute.xlu0 %872
        %874 = vrot.lane.b32.xlu0 %v830, 28
        %v875 = vpop.permute.xlu0 %874
        %876 = vrot.lane.b32.xlu0 %v831, 28
        %v877 = vpop.permute.xlu0 %876
        %878 = vrot.lane.b32.xlu0 %v832, 28
        %v879 = vpop.permute.xlu0 %878
        %880 = vrot.lane.b32.xlu0 %v833, 28
        %v881 = vpop.permute.xlu0 %880
        %vm898 = vcmask 261344
        %899 = vst.msk [vmem:[#allocation2] sm:$0xff] %vm898, %v851
        %900 = vst.msk [vmem:[#allocation2 + $0x8] sm:$0xff] %vm898, %v853
        %901 = vst.msk [vmem:[#allocation2 + $0x10] sm:$0xff] %vm898, %v855
        %902 = vst.msk [vmem:[#allocation2 + $0x18] sm:$0xff] %vm898, %v857
        %903 = vst.msk [vmem:[#allocation2 + $0x20] sm:$0xff] %vm898, %v859
        %904 = vst.msk [vmem:[#allocation2 + $0x28] sm:$0xff] %vm898, %v861
        %905 = vst.msk [vmem:[#allocation2 + $0x30] sm:$0xff] %vm898, %v863
        %906 = vst.msk [vmem:[#allocation2 + $0x38] sm:$0xff] %vm898, %v865
        %907 = vst.msk [vmem:[#allocation2 + $0x40] sm:$0xff] %vm898, %v867
        %908 = vst.msk [vmem:[#allocation2 + $0x48] sm:$0xff] %vm898, %v869
        %909 = vst.msk [vmem:[#allocation2 + $0x50] sm:$0xff] %vm898, %v871
        %910 = vst.msk [vmem:[#allocation2 + $0x58] sm:$0xff] %vm898, %v873
        %911 = vst.msk [vmem:[#allocation2 + $0x60] sm:$0xff] %vm898, %v875
        %912 = vst.msk [vmem:[#allocation2 + $0x68] sm:$0xff] %vm898, %v877
        %913 = vst.msk [vmem:[#allocation2 + $0x70] sm:$0xff] %vm898, %v879
        %914 = vst.msk [vmem:[#allocation2 + $0x78] sm:$0xff] %vm898, %v881
        %v915 = vld [vmem:[%s720 + $0x2] sm:$0xff]
        %v916 = vld [vmem:[%s720 + $0xa] sm:$0xff]
        %v917 = vld [vmem:[%s720 + $0x1a] sm:$0xff]
        %v918 = vld [vmem:[%s720 + $0x22] sm:$0xff]
        %v919 = vld [vmem:[%s720 + $0x32] sm:$0xff]
        %v920 = vld [vmem:[%s720 + $0x3a] sm:$0xff]
        %v921 = vld [vmem:[%s720 + $0x4a] sm:$0xff]
        %v922 = vld [vmem:[%s720 + $0x52] sm:$0xff]
        %v923 = vld [vmem:[%s720 + $0x62] sm:$0xff]
        %v924 = vld [vmem:[%s720 + $0x6a] sm:$0xff]
        %v925 = vld [vmem:[%s720 + $0x7a] sm:$0xff]
        %v926 = vld [vmem:[%s720 + $0x82] sm:$0xff]
        %v927 = vld [vmem:[%s720 + $0x92] sm:$0xff]
        %v928 = vld [vmem:[%s720 + $0x9a] sm:$0xff]
        %v929 = vld [vmem:[%s720 + $0xaa] sm:$0xff]
        %v930 = vld [vmem:[%s720 + $0xb2] sm:$0xff]
        %947 = vrot.lane.b32.xlu0 %v915, 32
        %v948 = vpop.permute.xlu0 %947
        %949 = vrot.lane.b32.xlu0 %v916, 32
        %v950 = vpop.permute.xlu0 %949
        %951 = vrot.lane.b32.xlu0 %v917, 32
        %v952 = vpop.permute.xlu0 %951
        %953 = vrot.lane.b32.xlu0 %v918, 32
        %v954 = vpop.permute.xlu0 %953
        %955 = vrot.lane.b32.xlu0 %v919, 32
        %v956 = vpop.permute.xlu0 %955
        %957 = vrot.lane.b32.xlu0 %v920, 32
        %v958 = vpop.permute.xlu0 %957
        %959 = vrot.lane.b32.xlu0 %v921, 32
        %v960 = vpop.permute.xlu0 %959
        %961 = vrot.lane.b32.xlu0 %v922, 32
        %v962 = vpop.permute.xlu0 %961
        %963 = vrot.lane.b32.xlu0 %v923, 32
        %v964 = vpop.permute.xlu0 %963
        %965 = vrot.lane.b32.xlu0 %v924, 32
        %v966 = vpop.permute.xlu0 %965
        %967 = vrot.lane.b32.xlu0 %v925, 32
        %v968 = vpop.permute.xlu0 %967
        %969 = vrot.lane.b32.xlu0 %v926, 32
        %v970 = vpop.permute.xlu0 %969
        %971 = vrot.lane.b32.xlu0 %v927, 32
        %v972 = vpop.permute.xlu0 %971
        %973 = vrot.lane.b32.xlu0 %v928, 32
        %v974 = vpop.permute.xlu0 %973
        %975 = vrot.lane.b32.xlu0 %v929, 32
        %v976 = vpop.permute.xlu0 %975
        %977 = vrot.lane.b32.xlu0 %v930, 32
        %v978 = vpop.permute.xlu0 %977
        %vm995 = vcmask 294144
        %996 = vst.msk [vmem:[#allocation2] sm:$0xff] %vm995, %v948
        %997 = vst.msk [vmem:[#allocation2 + $0x8] sm:$0xff] %vm995, %v950
        %998 = vst.msk [vmem:[#allocation2 + $0x10] sm:$0xff] %vm995, %v952
        %999 = vst.msk [vmem:[#allocation2 + $0x18] sm:$0xff] %vm995, %v954
        %1000 = vst.msk [vmem:[#allocation2 + $0x20] sm:$0xff] %vm995, %v956
        %1001 = vst.msk [vmem:[#allocation2 + $0x28] sm:$0xff] %vm995, %v958
        %1002 = vst.msk [vmem:[#allocation2 + $0x30] sm:$0xff] %vm995, %v960
        %1003 = vst.msk [vmem:[#allocation2 + $0x38] sm:$0xff] %vm995, %v962
        %1004 = vst.msk [vmem:[#allocation2 + $0x40] sm:$0xff] %vm995, %v964
        %1005 = vst.msk [vmem:[#allocation2 + $0x48] sm:$0xff] %vm995, %v966
        %1006 = vst.msk [vmem:[#allocation2 + $0x50] sm:$0xff] %vm995, %v968
        %1007 = vst.msk [vmem:[#allocation2 + $0x58] sm:$0xff] %vm995, %v970
        %1008 = vst.msk [vmem:[#allocation2 + $0x60] sm:$0xff] %vm995, %v972
        %1009 = vst.msk [vmem:[#allocation2 + $0x68] sm:$0xff] %vm995, %v974
        %1010 = vst.msk [vmem:[#allocation2 + $0x70] sm:$0xff] %vm995, %v976
        %1011 = vst.msk [vmem:[#allocation2 + $0x78] sm:$0xff] %vm995, %v978
        %v1012 = vld [vmem:[#allocation2] sm:$0xff]
        %v1013 = vld [vmem:[#allocation2 + $0x8] sm:$0xff]
        %v1014 = vld [vmem:[#allocation2 + $0x10] sm:$0xff]
        %v1015 = vld [vmem:[#allocation2 + $0x18] sm:$0xff]
        %v1016 = vld [vmem:[#allocation2 + $0x20] sm:$0xff]
        %v1017 = vld [vmem:[#allocation2 + $0x28] sm:$0xff]
        %v1018 = vld [vmem:[#allocation2 + $0x30] sm:$0xff]
        %v1019 = vld [vmem:[#allocation2 + $0x38] sm:$0xff]
        %v1020 = vld [vmem:[#allocation2 + $0x40] sm:$0xff]
        %v1021 = vld [vmem:[#allocation2 + $0x48] sm:$0xff]
        %v1022 = vld [vmem:[#allocation2 + $0x50] sm:$0xff]
        %v1023 = vld [vmem:[#allocation2 + $0x58] sm:$0xff]
        %v1024 = vld [vmem:[#allocation2 + $0x60] sm:$0xff]
        %v1025 = vld [vmem:[#allocation2 + $0x68] sm:$0xff]
        %v1026 = vld [vmem:[#allocation2 + $0x70] sm:$0xff]
        %v1027 = vld [vmem:[#allocation2 + $0x78] sm:$0xff]
        %v1028 = vld [vmem:[%s1] sm:$0xff]
        %v1029 = vld [vmem:[%s1 + $0x8] sm:$0xff]
        %v1030 = vld [vmem:[%s1 + $0x10] sm:$0xff]
        %v1031 = vld [vmem:[%s1 + $0x18] sm:$0xff]
        %v1032 = vld [vmem:[%s1 + $0x20] sm:$0xf]
        %vm1033 = vcmask 293888
        %v1035 = vsel %vm1033, %v1012, 0
        %v1038 = vsel %vm1033, %v1013, 0
        %v1041 = vsel %vm1033, %v1014, 0
        %v1044 = vsel %vm1033, %v1015, 0
        %v1047 = vsel %vm1033, %v1016, 0
        %v1050 = vsel %vm1033, %v1017, 0
        %v1053 = vsel %vm1033, %v1018, 0
        %v1056 = vsel %vm1033, %v1019, 0
        %v1059 = vsel %vm1033, %v1020, 0
        %v1062 = vsel %vm1033, %v1021, 0
        %v1065 = vsel %vm1033, %v1022, 0
        %v1068 = vsel %vm1033, %v1023, 0
        %v1071 = vsel %vm1033, %v1024, 0
        %v1074 = vsel %vm1033, %v1025, 0
        %v1077 = vsel %vm1033, %v1026, 0
        %v1080 = vsel %vm1033, %v1027, 0
        %vm1082 = vcmask 1043456
        %v1084 = vsel %vm1082, %v1032, 0
        %1086 = vmatprep.subr.mxu0 0.0
        %1087 = vmatpush1.msra.mxu0 0.0
        %1088 = vmatprep.subr.mxu0 0.0
        %1089 = vmatpush1.msra.mxu0 0.0
        %1090 = vmatprep.subr.mxu0 0.0
        %1091 = vmatpush1.msra.mxu0 0.0
        %1092 = vmatprep.subr.mxu0 0.0
        %1093 = vmatpush1.msra.mxu0 0.0
        %1094 = vmatprep.subr.mxu0 0.0
        %1095 = vmatpush1.msra.mxu0 0.0
        %1096 = vmatprep.subr.mxu0 0.0
        %1097 = vmatpush1.msra.mxu0 0.0
        %1098 = vmatprep.subr.mxu0 0.0
        %1099 = vmatpush1.msra.mxu0 0.0
        %1100 = vmatprep.subr.mxu0 0.0
        %1101 = vmatpush1.msra.mxu0 0.0
        %1102 = vmatprep.subr.mxu0 0.0
        %1103 = vmatpush1.msra.mxu0 0.0
        %1104 = vmatprep.subr.mxu0 0.0
        %1105 = vmatpush1.msra.mxu0 0.0
        %1106 = vmatprep.subr.mxu0 0.0
        %1107 = vmatpush1.msra.mxu0 0.0
        %1108 = vmatprep.subr.mxu0 0.0
        %1109 = vmatpush1.msra.mxu0 %v1084
        %1110 = vmatprep.subr.mxu0 0.0
        %1111 = vmatpush1.msra.mxu0 %v1031
        %1112 = vmatprep.subr.mxu0 0.0
        %1113 = vmatpush1.msra.mxu0 %v1030
        %1114 = vmatprep.subr.mxu0 0.0
        %1115 = vmatpush1.msra.mxu0 %v1029
        %1116 = vmatprep.subr.mxu0 0.0
        %1117 = vmatpush1.msra.mxu0 %v1028
        %1118 = vmatprep.subr.mxu0 0.0
        %1119 = vmatpush2.msra.mxu0 0.0
        %1120 = vmatprep.subr.mxu0 0.0
        %1121 = vmatpush2.msra.mxu0 0.0
        %1122 = vmatprep.subr.mxu0 0.0
        %1123 = vmatpush2.msra.mxu0 0.0
        %1124 = vmatprep.subr.mxu0 0.0
        %1125 = vmatpush2.msra.mxu0 0.0
        %1126 = vmatprep.subr.mxu0 0.0
        %1127 = vmatpush2.msra.mxu0 0.0
        %1128 = vmatprep.subr.mxu0 0.0
        %1129 = vmatpush2.msra.mxu0 0.0
        %1130 = vmatprep.subr.mxu0 0.0
        %1131 = vmatpush2.msra.mxu0 0.0
        %1132 = vmatprep.subr.mxu0 0.0
        %1133 = vmatpush2.msra.mxu0 0.0
        %1134 = vmatprep.subr.mxu0 0.0
        %1135 = vmatpush2.msra.mxu0 0.0
        %1136 = vmatprep.subr.mxu0 0.0
        %1137 = vmatpush2.msra.mxu0 0.0
        %1138 = vmatprep.subr.mxu0 0.0
        %1139 = vmatpush2.msra.mxu0 0.0
        %1140 = vmatprep.subr.mxu0 0.0
        %1141 = vmatpush2.msra.mxu0 0.0
        %1142 = vmatprep.subr.mxu0 0.0
        %1143 = vmatpush2.msra.mxu0 0.0
        %1144 = vmatprep.subr.mxu0 0.0
        %1145 = vmatpush2.msra.mxu0 0.0
        %1146 = vmatprep.subr.mxu0 0.0
        %1147 = vmatpush2.msra.mxu0 0.0
        %1148 = vmatprep.subr.mxu0 0.0
        %1149 = vmatpush2.msra.mxu0 0.0
        %1150 = vmatprep.mubr.f32.mxu0 0.0
        %1151 = vmatmul.mubr.f32.gmra.mxu0 %v1035
        %v1152 = vpop.f32.mrf.mxu0
        %v1153 = vadd.f32 0.0, %v1152
        %v1154 = vpop.f32.mrf.mxu0
        %1155 = vmatprep.mubr.f32.mxu0 0.0
        %1156 = vmatmul.mubr.f32.gmra.mxu0 %v1038
        %v1157 = vpop.f32.mrf.mxu0
        %v1158 = vadd.f32 0.0, %v1157
        %v1159 = vpop.f32.mrf.mxu0
        %1160 = vmatprep.mubr.f32.mxu0 0.0
        %1161 = vmatmul.mubr.f32.gmra.mxu0 %v1041
        %v1162 = vpop.f32.mrf.mxu0
        %v1163 = vadd.f32 0.0, %v1162
        %v1164 = vpop.f32.mrf.mxu0
        %1165 = vmatprep.mubr.f32.mxu0 0.0
        %1166 = vmatmul.mubr.f32.gmra.mxu0 %v1044
        %v1167 = vpop.f32.mrf.mxu0
        %v1168 = vadd.f32 0.0, %v1167
        %v1169 = vpop.f32.mrf.mxu0
        %1170 = vmatprep.mubr.f32.mxu0 0.0
        %1171 = vmatmul.mubr.f32.gmra.mxu0 %v1047
        %v1172 = vpop.f32.mrf.mxu0
        %v1173 = vadd.f32 0.0, %v1172
        %v1174 = vpop.f32.mrf.mxu0
        %1175 = vmatprep.mubr.f32.mxu0 0.0
        %1176 = vmatmul.mubr.f32.gmra.mxu0 %v1050
        %v1177 = vpop.f32.mrf.mxu0
        %v1178 = vadd.f32 0.0, %v1177
        %v1179 = vpop.f32.mrf.mxu0
        %1180 = vmatprep.mubr.f32.mxu0 0.0
        %1181 = vmatmul.mubr.f32.gmra.mxu0 %v1053
        %v1182 = vpop.f32.mrf.mxu0
        %v1183 = vadd.f32 0.0, %v1182
        %v1184 = vpop.f32.mrf.mxu0
        %1185 = vmatprep.mubr.f32.mxu0 0.0
        %1186 = vmatmul.mubr.f32.gmra.mxu0 %v1056
        %v1187 = vpop.f32.mrf.mxu0
        %v1188 = vadd.f32 0.0, %v1187
        %v1189 = vpop.f32.mrf.mxu0
        %1190 = vmatprep.mubr.f32.mxu0 0.0
        %1191 = vmatmul.mubr.f32.gmra.mxu0 %v1059
        %v1192 = vpop.f32.mrf.mxu0
        %v1193 = vadd.f32 0.0, %v1192
        %v1194 = vpop.f32.mrf.mxu0
        %1195 = vmatprep.mubr.f32.mxu0 0.0
        %1196 = vmatmul.mubr.f32.gmra.mxu0 %v1062
        %v1197 = vpop.f32.mrf.mxu0
        %v1198 = vadd.f32 0.0, %v1197
        %v1199 = vpop.f32.mrf.mxu0
        %1200 = vmatprep.mubr.f32.mxu0 0.0
        %1201 = vmatmul.mubr.f32.gmra.mxu0 %v1065
        %v1202 = vpop.f32.mrf.mxu0
        %v1203 = vadd.f32 0.0, %v1202
        %v1204 = vpop.f32.mrf.mxu0
        %1205 = vmatprep.mubr.f32.mxu0 0.0
        %1206 = vmatmul.mubr.f32.gmra.mxu0 %v1068
        %v1207 = vpop.f32.mrf.mxu0
        %v1208 = vadd.f32 0.0, %v1207
        %v1209 = vpop.f32.mrf.mxu0
        %1210 = vmatprep.mubr.f32.mxu0 0.0
        %1211 = vmatmul.mubr.f32.gmra.mxu0 %v1071
        %v1212 = vpop.f32.mrf.mxu0
        %v1213 = vadd.f32 0.0, %v1212
        %v1214 = vpop.f32.mrf.mxu0
        %1215 = vmatprep.mubr.f32.mxu0 0.0
        %1216 = vmatmul.mubr.f32.gmra.mxu0 %v1074
        %v1217 = vpop.f32.mrf.mxu0
        %v1218 = vadd.f32 0.0, %v1217
        %v1219 = vpop.f32.mrf.mxu0
        %1220 = vmatprep.mubr.f32.mxu0 0.0
        %1221 = vmatmul.mubr.f32.gmra.mxu0 %v1077
        %v1222 = vpop.f32.mrf.mxu0
        %v1223 = vadd.f32 0.0, %v1222
        %v1224 = vpop.f32.mrf.mxu0
        %1225 = vmatprep.mubr.f32.mxu0 0.0
        %1226 = vmatmul.mubr.f32.gmra.mxu0 %v1080
        %v1227 = vpop.f32.mrf.mxu0
        %v1228 = vadd.f32 0.0, %v1227
        %v1229 = vpop.f32.mrf.mxu0
        %1230 = vdwg.mxu0
        %1231 = vxpose.xlu0.b32.start [1/16] %v1153, 128
        %1232 = vxpose.xlu0.b32.cont [2/16] %v1158, 128
        %1233 = vxpose.xlu0.b32.cont [3/16] %v1163, 128
        %1234 = vxpose.xlu0.b32.cont [4/16] %v1168, 128
        %1235 = vxpose.xlu0.b32.cont [5/16] %v1173, 128
        %1236 = vxpose.xlu0.b32.cont [6/16] %v1178, 128
        %1237 = vxpose.xlu0.b32.cont [7/16] %v1183, 128
        %1238 = vxpose.xlu0.b32.cont [8/16] %v1188, 128
        %1239 = vxpose.xlu0.b32.cont [9/16] %v1193, 128
        %1240 = vxpose.xlu0.b32.cont [10/16] %v1198, 128
        %1241 = vxpose.xlu0.b32.cont [11/16] %v1203, 128
        %1242 = vxpose.xlu0.b32.cont [12/16] %v1208, 128
        %1243 = vxpose.xlu0.b32.cont [13/16] %v1213, 128
        %1244 = vxpose.xlu0.b32.cont [14/16] %v1218, 128
        %1245 = vxpose.xlu0.b32.cont [15/16] %v1223, 128
        %1246 = vxpose.xlu0.b32.end [16/16] %v1228, 128
        %v1247 = vpop.trf.xlu0
        %v1248 = vpop.trf.xlu0
        %v1249 = vpop.trf.xlu0
        %v1250 = vpop.trf.xlu0
        %v1251 = vpop.trf.xlu0
        %v1252 = vpop.trf.xlu0
        %v1253 = vpop.trf.xlu0
        %v1254 = vpop.trf.xlu0
        %v1255 = vpop.trf.xlu0
        %v1256 = vpop.trf.xlu0
        %v1257 = vpop.trf.xlu0
        %v1258 = vpop.trf.xlu0
        %v1259 = vpop.trf.xlu0
        %v1260 = vpop.trf.xlu0
        %v1261 = vpop.trf.xlu0
        %v1262 = vpop.trf.xlu0
        %v1263 = vld [vmem:[%s2] sm:$0xff]
        %1265 = vset.pattern.permute.xlu0 0
        %1266 = vperm.xlu0 %1265, %v1263
        %v1267 = vpop.permute.xlu0 %1266
        %v1269 = vadd.f32 %v1247, %v1267
        %v1270 = vmax.f32 %v1269, 0.0
        %1271 = vst [vmem:[%s189] sm:$0xff] %v1270
        %s1272 = sand.u32 %s113, 1
        %s1273 = scalar_lea.sflag [#allocation4], %s1272
        %s1274 = sand.u32 %s113, 1
        %s1275 = smul.addr %s1274, 8
        %s1276 = scalar_lea.vmem [#allocation3], %s1275
        // Predicated region
        $region33: #{tpu_custom_call.1} parent=31 // pred_check
          %p1277 = pneg %p123
        $region34: #{tpu_custom_call.1} parent=31 // pred_check_branch
          %1279 = sbr.rel (%p1277) target = $region36
        $region35: #{tpu_custom_call.1} parent=31 // pred_region
          %s1280 = smul.u32 %s21, 2
          %s1281 = sadd.s32 %s1280, %s22
          %s1283 = ssub.s32 128, 128
          %1284 = vsyncadd %s1273, %s1283
          %s1285 = smul.addr %s1281, 128
          %s1286 = scalar_lea.hbm %s3, %s1285
          %s1288 = sshll.u32 %s1276, 4
          %s1289 = int_to_ptr.vmem [resolvable:$true] %s1288
          %1291 = dma.vmem_to_hbm [thread:$0]  %s1289, 128, %s1286, %s1273
        $region36: #{tpu_custom_call.1} parent=31 // pred_fallthru
          _
      $region32: #{tpu_custom_call.1} parent=5 // pred_fallthru
        _
      %p1292 = scmp.le.s32.totalorder 2, %s12
      // Predicated region
      $region37: #{tpu_custom_call.1} parent=5 // pred_check
        %p1293 = pneg %p1292
      $region38: #{tpu_custom_call.1} parent=5 // pred_check_branch
        %1295 = sbr.rel (%p1293) target = $region40
      $region39: #{tpu_custom_call.1} parent=5 // pred_region
        %s1296 = ssub.s32 %s12, 2
        // Predicated region
        $region41: #{tpu_custom_call.1} parent=39 // pred_check
          %p1297 = pneg %p129
        $region42: #{tpu_custom_call.1} parent=39 // pred_check_branch
          %1299 = sbr.rel (%p1297) target = $region44
        $region43: #{tpu_custom_call.1} parent=39 // pred_region
          %s1300 = sand.u32 %s114, 1
          %s1301 = scalar_lea.sflag [#allocation4], %s1300
          %s1302 = sand.u32 %s114, 1
          %s1303 = smul.addr %s1302, 8
          %s1304 = scalar_lea.vmem [#allocation3], %s1303
          %1305 = dma.done %s1301, 128
        $region44: #{tpu_custom_call.1} parent=39 // pred_fallthru
          _
      $region40: #{tpu_custom_call.1} parent=5 // pred_fallthru
        _
    $region6: #{tpu_custom_call.1} parent=1 // loop_footer
      %s16 = sadd.s32 1, %s12
    $region7: #{tpu_custom_call.1} parent=1 // loop_footer_branch
      %11 = sbr.rel target = $region3
    $region8: #{tpu_custom_call.1} parent=1 // loop_exit
      _
    %1306 = vsyncpa [#allocation4], 1
    %s1307 = scalar_lea.sflag [#allocation4], 1
    %1308 = vsyncpa %s1307, 1

</llo_original>
